<compile_context>
chip_gen: v7x
topology: tpu7x:2x2x1
jax: 0.10.0
libtpu: 0.0.40
codegen_flags: <defaults>
</compile_context>

<pallas_src>
import functools

import jax
import jax.numpy as jnp
from jax.experimental import pallas as pl
from jax.experimental.pallas import tpu as pltpu


def _ls_ce_kernel(pred_ref, tgt_ref, out_ref, *, smoothing, n_total, n_classes):
    """Writes the partial (un-normalized) loss sum for one row tile."""
    pred = pred_ref[...]                        # (TN, C) in the input dtype
    tgt = tgt_ref[...]                          # (TN, 1) int32
    tn, c = pred.shape

    # Numerically stable logsumexp: elementwise work in the input dtype,
    # upcast at the exp/reduction boundary, accumulate in f32.
    m = jnp.max(pred, axis=1, keepdims=True)                          # (TN,1)
    shifted = (pred - m).astype(jnp.float32)                          # (TN,C)
    sum_exp = jnp.sum(jnp.exp(shifted), axis=1, keepdims=True)        # (TN,1) f32
    lse = m.astype(jnp.float32) + jnp.log(sum_exp)                    # (TN,1) f32

    # Since sum_c true_dist = 1:
    #   expected_n = (1-s)*pred[n,t_n] + s/(C-1)*(rowsum_n - pred[n,t_n])
    #   loss_n     = lse_n - expected_n
    # -> only two row statistics, no (TN, C) true_dist / log_prob tiles.
    class_ids = jax.lax.broadcasted_iota(jnp.int32, (tn, c), 1)       # (TN,C)
    onehot = class_ids == tgt                                         # (TN,C) bool
    tgt_logit = jnp.sum(jnp.where(onehot, pred, 0), axis=1,
                        keepdims=True, dtype=jnp.float32)             # f32 accum
    rowsum = jnp.sum(pred, axis=1, keepdims=True, dtype=jnp.float32)  # f32 accum

    on_val = jnp.float32(1.0 - smoothing)
    off_val = (jnp.float32(smoothing / (n_classes - 1))
               if n_classes > 1 else jnp.float32(0.0))
    expected = on_val * tgt_logit + off_val * (rowsum - tgt_logit)    # (TN,1)
    per_row = lse - expected                                          # (TN,1)

    # Drop rows past the true N (trailing partial block).  Must be a select
    # (not a multiply) so garbage NaN/Inf from the unpadded tail never
    # propagates into the tile sum.
    row0 = pl.program_id(0) * tn
    row_ids = jax.lax.broadcasted_iota(jnp.int32, (tn, 1), 0) + row0
    per_row = jnp.where(row_ids < n_total, per_row, 0.0)

    # Lane-dense (1, 8, 128) output block: broadcast the tile's partial sum.
    out_ref[...] = jnp.full(out_ref.shape, jnp.sum(per_row), dtype=jnp.float32)


def label_smoothing_cross_entropy(pred, target, smoothing=0.1, *,
                                  max_rows_per_tile=None):
    """pred: (N, C) float (any float dtype), target: (N,) int -> scalar f32."""
    n, c = pred.shape
    itemsize = jnp.dtype(pred.dtype).itemsize

    # Row-tile sizing from a VMEM byte budget.  Per row, the double-buffered
    # pipeline holds c*itemsize bytes of pred plus a lane-padded (TN,1) int32
    # target row (128 lanes * 4 B = 512 B).  ~8 MiB of pipeline buffers keeps
    # pred tiles in the multi-MiB range (amortizes the ~0.35 us per-grid-step
    # cost) while leaving >20 MiB of the 32 MiB scoped VMEM for in-kernel
    # intermediates on v5e / v6e / v7x.
    pipeline_budget = 8 * 1024 * 1024
    per_row_bytes = 2 * (c * itemsize + 512)          # x2: double buffering
    tn = max(8, (pipeline_budget // per_row_bytes) // 8 * 8)
    tn = min(tn, pl.cdiv(n, 8) * 8)                   # single tile for small N
    if max_rows_per_tile is not None:                 # test / tuning hook
        tn = min(tn, max(8, max_rows_per_tile // 8 * 8))

    num_tiles = pl.cdiv(n, tn)
    tgt2d = target.astype(jnp.int32).reshape(n, 1)    # tiny; pred is NOT padded

    kernel = functools.partial(_ls_ce_kernel, smoothing=smoothing,
                               n_total=n, n_classes=c)

    partials = pl.pallas_call(
        kernel,
        out_shape=jax.ShapeDtypeStruct((num_tiles, 8, 128), jnp.float32),
        grid=(num_tiles,),
        in_specs=[
            pl.BlockSpec((tn, c), lambda i: (i, 0)),   # stream pred row tiles
            pl.BlockSpec((tn, 1), lambda i: (i, 0)),   # matching target rows
        ],
        out_specs=pl.BlockSpec((1, 8, 128), lambda i: (i, 0, 0)),
        compiler_params=pltpu.CompilerParams(
            dimension_semantics=("parallel",),
            vmem_limit_bytes=32 * 1024 * 1024,
        ),
        cost_estimate=pl.CostEstimate(
            flops=8 * n * c,
            transcendentals=n * c,
            bytes_accessed=n * c * itemsize + n * 4 + num_tiles * 8 * 128 * 4,
        ),
    )(pred, tgt2d)

    # Final mean over the true (unpadded) batch, in XLA.
    return jnp.sum(partials[:, 0, 0]) / jnp.float32(n)


def _reference(pred, target, smoothing=0.1):
    n, c = pred.shape
    log_probs = jax.nn.log_softmax(pred.astype(jnp.float32), axis=1)
    true_dist = jnp.full((n, c), smoothing / (c - 1), dtype=jnp.float32)
    true_dist = true_dist.at[jnp.arange(n), target].set(1.0 - smoothing)
    return jnp.mean(jnp.sum(-true_dist * log_probs, axis=1))


if __name__ == "__main__":
    key = jax.random.PRNGKey(0)
    k1, k2, k3, k4 = jax.random.split(key, 4)

    # Case 1: small f32 problem, single tile.
    N1, C1 = 16, 32
    pred1 = jax.random.normal(k1, (N1, C1), dtype=jnp.float32)
    tgt1 = jax.random.randint(k2, (N1,), 0, C1, dtype=jnp.int32)
    loss1 = label_smoothing_cross_entropy(pred1, tgt1, smoothing=0.1)
    jax.block_until_ready(loss1)
    ref1 = _reference(pred1, tgt1, smoothing=0.1)
    assert jnp.allclose(loss1, ref1, atol=1e-5, rtol=1e-5), (loss1, ref1)

    # Case 2: multi-tile grid with a ragged (partial) trailing row block,
    # exercising the no-pad path and the per-tile partial outputs.
    N2, C2 = 37, 24
    pred2 = jax.random.normal(k3, (N2, C2), dtype=jnp.float32)
    tgt2 = jax.random.randint(k4, (N2,), 0, C2, dtype=jnp.int32)
    loss2 = label_smoothing_cross_entropy(pred2, tgt2, smoothing=0.2,
                                          max_rows_per_tile=8)
    jax.block_until_ready(loss2)
    ref2 = _reference(pred2, tgt2, smoothing=0.2)
    assert jnp.allclose(loss2, ref2, atol=1e-5, rtol=1e-5), (loss2, ref2)

    # Case 3: bf16 logits streamed in their own dtype (f32 only at reductions).
    pred3 = pred1.astype(jnp.bfloat16)
    loss3 = label_smoothing_cross_entropy(pred3, tgt1, smoothing=0.1)
    jax.block_until_ready(loss3)
    ref3 = _reference(pred3.astype(jnp.float32), tgt1, smoothing=0.1)
    assert jnp.allclose(loss3, ref3, atol=5e-2, rtol=5e-2), (loss3, ref3)

    print("KERNEL_OK")
</pallas_src>

<mosaic_0001>
module attributes {stable_mosaic.version = 11 : i64} {
  func.func @_ls_ce_kernel(%arg0: i32, %arg1: memref<16x32xf32, #tpu.memory_space<vmem>>, %arg2: memref<16x1xi32, #tpu.memory_space<vmem>>, %arg3: memref<1x8x128xf32, #tpu.memory_space<vmem>>) attributes {dimension_semantics = [#tpu.dimension_semantics<parallel>], iteration_bounds = array<i64: 1>, scalar_prefetch = 0 : i64, scratch_operands = 0 : i64, tpu.core_type = #tpu.core_type<tc>, window_params = [{transform_indices = @transform_0, window_bounds = array<i64: 16, 32>}, {transform_indices = @transform_1, window_bounds = array<i64: 16, 1>}, {transform_indices = @transform_2, window_bounds = array<i64: 1, 8, 128>}]} {
    %c0 = arith.constant 0 : index
    %c0_0 = arith.constant 0 : index
    %0 = vector.load %arg1[%c0, %c0_0] : memref<16x32xf32, #tpu.memory_space<vmem>>, vector<16x32xf32>
    %c0_1 = arith.constant 0 : index
    %c0_2 = arith.constant 0 : index
    %1 = vector.load %arg2[%c0_1, %c0_2] : memref<16x1xi32, #tpu.memory_space<vmem>>, vector<16x1xi32>
    %cst = arith.constant dense<0xFF800000> : vector<16xf32>
    %2 = vector.multi_reduction <maximumf>, %0, %cst [1] : vector<16x32xf32> to vector<16xf32>
    %3 = vector.shape_cast %2 : vector<16xf32> to vector<16x1xf32>
    %4 = vector.broadcast %3 : vector<16x1xf32> to vector<16x32xf32>
    %5 = arith.subf %0, %4 : vector<16x32xf32>
    %6 = math.exp %5 : vector<16x32xf32>
    %cst_3 = arith.constant dense<0.000000e+00> : vector<16xf32>
    %7 = vector.multi_reduction <add>, %6, %cst_3 [1] : vector<16x32xf32> to vector<16xf32>
    %8 = vector.shape_cast %7 : vector<16xf32> to vector<16x1xf32>
    %9 = math.log %8 : vector<16x1xf32>
    %10 = arith.addf %3, %9 : vector<16x1xf32>
    %11 = tpu.iota {dimensions = array<i32: 1>} : vector<16x32xi32>
    %12 = vector.broadcast %1 : vector<16x1xi32> to vector<16x32xi32>
    %13 = arith.cmpi eq, %11, %12 : vector<16x32xi32>
    %c0_i32 = arith.constant 0 : i32
    %14 = arith.sitofp %c0_i32 : i32 to f32
    %15 = vector.broadcast %14 : f32 to vector<16x32xf32>
    %16 = arith.select %13, %0, %15 : vector<16x32xi1>, vector<16x32xf32>
    %cst_4 = arith.constant dense<0.000000e+00> : vector<16xf32>
    %17 = vector.multi_reduction <add>, %16, %cst_4 [1] : vector<16x32xf32> to vector<16xf32>
    %18 = vector.shape_cast %17 : vector<16xf32> to vector<16x1xf32>
    %cst_5 = arith.constant dense<0.000000e+00> : vector<16xf32>
    %19 = vector.multi_reduction <add>, %0, %cst_5 [1] : vector<16x32xf32> to vector<16xf32>
    %20 = vector.shape_cast %19 : vector<16xf32> to vector<16x1xf32>
    %cst_6 = arith.constant 0.899999976 : f32
    %21 = vector.broadcast %cst_6 : f32 to vector<16x1xf32>
    %22 = arith.mulf %21, %18 : vector<16x1xf32>
    %23 = arith.subf %20, %18 : vector<16x1xf32>
    %cst_7 = arith.constant 0.0032258064 : f32
    %24 = vector.broadcast %cst_7 : f32 to vector<16x1xf32>
    %25 = arith.mulf %24, %23 : vector<16x1xf32>
    %26 = arith.addf %22, %25 : vector<16x1xf32>
    %27 = arith.subf %10, %26 : vector<16x1xf32>
    %c16_i32 = arith.constant 16 : i32
    %28 = arith.muli %arg0, %c16_i32 : i32
    %29 = tpu.iota {dimensions = array<i32: 0>} : vector<16x1xi32>
    %30 = vector.broadcast %28 : i32 to vector<16x1xi32>
    %31 = arith.addi %29, %30 : vector<16x1xi32>
    %c16_i32_8 = arith.constant 16 : i32
    %32 = vector.broadcast %c16_i32_8 : i32 to vector<16x1xi32>
    %33 = arith.cmpi slt, %31, %32 : vector<16x1xi32>
    %cst_9 = arith.constant 0.000000e+00 : f32
    %34 = vector.broadcast %cst_9 : f32 to vector<16x1xf32>
    %35 = arith.select %33, %27, %34 : vector<16x1xi1>, vector<16x1xf32>
    %36 = vector.shape_cast %35 : vector<16x1xf32> to vector<1x16x1xf32>
    %cst_10 = arith.constant dense<0.000000e+00> : vector<1xf32>
    %37 = vector.multi_reduction <add>, %36, %cst_10 [1, 2] : vector<1x16x1xf32> to vector<1xf32>
    %38 = vector.shape_cast %37 : vector<1xf32> to vector<1x1x1xf32>
    %39 = vector.extract %38[0, 0, 0] : f32 from vector<1x1x1xf32>
    %40 = vector.broadcast %39 : f32 to vector<1x8x128xf32>
    %c0_11 = arith.constant 0 : index
    %c0_12 = arith.constant 0 : index
    %c0_13 = arith.constant 0 : index
    %41 = vector.load %arg3[%c0_11, %c0_12, %c0_13] : memref<1x8x128xf32, #tpu.memory_space<vmem>>, vector<1x8x128xf32>
    tpu.vector_store %arg3[%c0_11, %c0_12, %c0_13], %40 {strides = array<i32>} : memref<1x8x128xf32, #tpu.memory_space<vmem>>, vector<1x8x128xf32>,
    return
  }
  func.func @transform_0(%arg0: i32) -> (i32, i32) {
    %c0_i32 = arith.constant 0 : i32
    %c0_i32_0 = arith.constant 0 : i32
    return %arg0, %c0_i32 : i32, i32
  }
  func.func @transform_1(%arg0: i32) -> (i32, i32) {
    %c0_i32 = arith.constant 0 : i32
    %c0_i32_0 = arith.constant 0 : i32
    return %arg0, %c0_i32 : i32, i32
  }
  func.func @transform_2(%arg0: i32) -> (i32, i32, i32) {
    %c0_i32 = arith.constant 0 : i32
    %c0_i32_0 = arith.constant 0 : i32
    %c0_i32_1 = arith.constant 0 : i32
    return %arg0, %c0_i32, %c0_i32_0 : i32, i32, i32
  }
}

</mosaic_0001>

<llo_original>
// kernel: tpu_custom_call.1
$region0: #{tpu_custom_call.1}
  #allocation0 [shape = 'u32[]', space=smem, size = 0x4, offset = 0x4, fixed_abs, tag = 'smem constant byte address 0x4 - core index']
  #allocation1 [shape = 'u32[144,128]{1,0:T(1,128)}', space=vmem, size = 0x12000, scoped, tag = 'internal scratch']
  %s0 = inlined_call_operand.vmem [shape: f32[16,32], index: 0, kind: input, shape index: {}]
  %s1 = inlined_call_operand.vmem [shape: s32[16,1], index: 1, kind: input, shape index: {}]
  %s2 = inlined_call_operand.hbm [shape: f32[1,8,128], index: 2, kind: output, shape index: {}]
  %s3 = sld [smem:[#allocation0]]
  $region18: #{tpu_custom_call.1} parent=0
    _
  %s5 = ssub.s32 1, %s3
  %s6 = scalar_select 0, %s5, %s3
  $region1: #{tpu_custom_call.1} parent=0
    #allocation2 [shape = 'u8[4096]{0}', space=vmem, size = 0x1000, scoped, tag = 'output window, operand 0, single buffered']
    #allocation3 [shape = 's32[1]{0}', space=sflag, size = 0x4, scoped, tag = 'scoped memory for tpu_custom_call.1']
    %7 = vsyncpa [#allocation3], 0
    // Predicated region
    $region2: #{tpu_custom_call.1} parent=1 // pred_check
      _
    $region3: #{tpu_custom_call.1} parent=1 // pred_check_branch
      %9 = sbr.rel (0) target = $region5
    $region4: #{tpu_custom_call.1} parent=1 // pred_region
      _
    $region5: #{tpu_custom_call.1} parent=1 // pred_fallthru
      _
    // Predicated region
    $region6: #{tpu_custom_call.1} parent=1 // pred_check
      _
    $region7: #{tpu_custom_call.1} parent=1 // pred_check_branch
      %11 = sbr.rel (0) target = $region9
    $region8: #{tpu_custom_call.1} parent=1 // pred_region
      _
    $region9: #{tpu_custom_call.1} parent=1 // pred_fallthru
      _
    %v12 = vld [vmem:[%s0] sm:$0xff]
    %v13 = vld [vmem:[%s0 + $0x8] sm:$0xff]
    %v14 = vld [vmem:[%s1] sm:$0xff]
    %v15 = vld [vmem:[%s1 + $0x8] sm:$0xff]
    %vm16 = vcmask 261120
    %v17 = vsel %vm16, %v12, -inf
    %18 = vmax.xlane.f32.xlu0 %v17
    %v19 = vpop.xlane.xlu0 %18
    %v20 = vsel %vm16, %v13, -inf
    %21 = vmax.xlane.f32.xlu0 %v20
    %v22 = vpop.xlane.xlu0 %21
    %v23 = vsub.f32 %v12, %v19
    %v24 = vsub.f32 %v13, %v22
    %v25 = vmul.f32 %v23, 1.442695
    %v26 = vpow.pop %v25
    %v27 = vmul.f32 %v24, 1.442695
    %v28 = vpow.pop %v27
    %v29 = vsel %vm16, %v26, 0.0
    %30 = vadd.xlane.f32.xlu0 %v29
    %v31 = vpop.xlane.xlu0 %30
    %v32 = vsel %vm16, %v28, 0.0
    %33 = vadd.xlane.f32.xlu0 %v32
    %v34 = vpop.xlane.xlu0 %33
    %v35 = vlog2.pop %v31
    %v36 = vmul.f32 %v35, 0.6931472
    %v37 = vlog2.pop %v34
    %v38 = vmul.f32 %v37, 0.6931472
    %v39 = vadd.f32 %v19, %v36
    %v40 = vadd.f32 %v22, %v38
    %v41 = vlaneseq
    %v42 = vand.u32 %v41, 127
    %43 = vset.pattern.permute.xlu0 0
    %44 = vperm.xlu0 %43, %v14
    %v45 = vpop.permute.xlu0 %44
    %46 = vset.pattern.permute.xlu0 0
    %47 = vperm.xlu0 %46, %v15
    %v48 = vpop.permute.xlu0 %47
    %vm49 = vcmp.eq.s32.totalorder %v42, %v45
    %vm50 = vcmp.eq.s32.totalorder %v42, %v48
    %v51 = vsel %vm49, %v12, 0.0
    %v52 = vsel %vm50, %v13, 0.0
    %v53 = vsel %vm16, %v51, 0.0
    %54 = vadd.xlane.f32.xlu0 %v53
    %v55 = vpop.xlane.xlu0 %54
    %v56 = vsel %vm16, %v52, 0.0
    %57 = vadd.xlane.f32.xlu0 %v56
    %v58 = vpop.xlane.xlu0 %57
    %v59 = vsel %vm16, %v12, 0.0
    %60 = vadd.xlane.f32.xlu0 %v59
    %v61 = vpop.xlane.xlu0 %60
    %v62 = vsel %vm16, %v13, 0.0
    %63 = vadd.xlane.f32.xlu0 %v62
    %v64 = vpop.xlane.xlu0 %63
    %v65 = vmul.f32 %v55, 0.9
    %v66 = vmul.f32 %v58, 0.9
    %v67 = vsub.f32 %v61, %v55
    %v68 = vsub.f32 %v64, %v58
    %v69 = vmul.f32 %v67, 0.0032258064
    %v70 = vmul.f32 %v68, 0.0032258064
    %v71 = vadd.f32 %v65, %v69
    %v72 = vadd.f32 %v66, %v70
    %v73 = vsub.f32 %v39, %v71
    %v74 = vsub.f32 %v40, %v72
    %s75 = smul.u32 0, 16
    %v76 = vlaneseq
    %v77 = vshrl.u32 %v76, 7
    %v78 = vadd.s32 %v77, 8
    %v79 = vstv %s75
    %v80 = vadd.s32 %v77, %v79
    %v81 = vadd.s32 %v78, %v79
    %vm82 = vcmp.lt.s32.totalorder %v80, 16
    %vm83 = vcmp.lt.s32.totalorder %v81, 16
    %v84 = vsel %vm82, %v73, 0.0
    %v85 = vsel %vm83, %v74, 0.0
    %vm86 = vcmask 7168
    %v87 = vsel %vm86, %v84, 0.0
    %v88 = vsel %vm86, %v85, 0.0
    %v89 = vadd.f32 %v87, %v88
    %90 = vadd.xlane.f32.xlu0 %v89
    %v91 = vpop.xlane.xlu0 %90
    %v92 = vrot.slane %v91, 4
    %v93 = vadd.f32 %v91, %v92
    %v94 = vrot.slane %v93, 2
    %v95 = vadd.f32 %v93, %v94
    %v96 = vrot.slane %v95, 1
    %v97 = vadd.f32 %v95, %v96
    %s98 = vtos %v97
    %v99 = vstv %s98
    %100 = vst [vmem:[#allocation2] sm:$0xff] %v99
    // Predicated region
    $region10: #{tpu_custom_call.1} parent=1 // pred_check
      _
    $region11: #{tpu_custom_call.1} parent=1 // pred_check_branch
      %102 = sbr.rel (0) target = $region13
    $region12: #{tpu_custom_call.1} parent=1 // pred_region
      %s104 = ssub.s32 128, 128
      %105 = vsyncadd [#allocation3], %s104
      %s107 = sshll.u32 [#allocation2], 4
      %s108 = int_to_ptr.vmem [resolvable:$true] %s107
      %110 = dma.vmem_to_hbm [thread:$0]  %s108, 128, %s2, [#allocation3]
    $region13: #{tpu_custom_call.1} parent=1 // pred_fallthru
      _
    // Predicated region
    $region14: #{tpu_custom_call.1} parent=1 // pred_check
      _
    $region15: #{tpu_custom_call.1} parent=1 // pred_check_branch
      %112 = sbr.rel (0) target = $region17
    $region16: #{tpu_custom_call.1} parent=1 // pred_region
      %113 = dma.done [#allocation3], 128
    $region17: #{tpu_custom_call.1} parent=1 // pred_fallthru
      _
    %114 = vsyncpa [#allocation3], 1

</llo_original>
